<compile_context>
chip_gen: v5e
topology: v5e:2x2
jax: 0.10.0
libtpu: 0.0.40
codegen_flags: <defaults>
</compile_context>

<pallas_src>
import functools

import jax
import jax.numpy as jnp
from jax.experimental import pallas as pl
from jax.experimental.pallas import tpu as pltpu


# ---------------------------------------------------------------------------
# Kernels
# ---------------------------------------------------------------------------
def _ce_onehot_kernel(logits_ref, labels_ref, loss_ref, *, s, m):
    """Fused cos-margin cross-entropy with one-hot labels streamed in.

    logits_ref: (TB, C) f32 or bf16
    labels_ref: (TB, C) strictly one-hot (any float/int dtype)
    loss_ref  : (1, TB) f32 lane-dense per-sample loss
    """
    x = logits_ref[...]
    lab = labels_ref[...]
    tb = x.shape[0]

    # Margin/select math in bf16 when inputs are bf16 (native bf16 VALU on
    # v6e/v7x; Mosaic upconverts internally on v5e).  LSE stays in f32.
    cdt = jnp.bfloat16 if x.dtype == jnp.bfloat16 else jnp.float32
    xs = x.astype(cdt)
    lab_c = lab.astype(cdt)
    # strictly one-hot labels:  s*(x - m*onehot)  ==  s*x - (s*m)*onehot
    margin = xs * float(s) - lab_c * float(s * m)

    # Numerically stable cross-entropy; exp evaluated exactly once (EUP).
    margin32 = margin.astype(jnp.float32)
    mx = jnp.max(margin32, axis=1, keepdims=True)                    # (TB, 1)
    lse = jnp.log(jnp.sum(jnp.exp(margin32 - mx),
                          axis=1, keepdims=True)) + mx               # (TB, 1)
    target = jnp.sum(margin32 * lab.astype(jnp.float32),
                     axis=1, keepdims=True)                          # (TB, 1)

    # Single small relayout -> lane-dense (1, TB) store (full-width vst).
    loss_ref[...] = jnp.reshape(lse - target, (1, tb))


def _ce_index_kernel(logits_ref, labels_ref, loss_ref, *, s, m):
    """Same loss with int32 class indices (lane-dense (1, TB) label block)."""
    x = logits_ref[...]
    tb, c = x.shape
    lbl = jnp.reshape(labels_ref[...], (tb, 1))                      # (TB, 1)
    col = jax.lax.broadcasted_iota(jnp.int32, (tb, c), 1)
    onehot = col == lbl

    cdt = jnp.bfloat16 if x.dtype == jnp.bfloat16 else jnp.float32
    sx = x.astype(cdt) * float(s)
    margin = jnp.where(onehot, sx - float(s * m), sx)

    margin32 = margin.astype(jnp.float32)
    mx = jnp.max(margin32, axis=1, keepdims=True)
    lse = jnp.log(jnp.sum(jnp.exp(margin32 - mx), axis=1, keepdims=True)) + mx
    target = jnp.sum(jnp.where(onehot, margin32, 0.0), axis=1, keepdims=True)
    loss_ref[...] = jnp.reshape(lse - target, (1, tb))


# ---------------------------------------------------------------------------
# Generation-aware tile sizing
# ---------------------------------------------------------------------------
def _choose_tiling(batch, nclass, logits_itemsize, labels_row_bytes):
    """Pick the batch-tile row count and the Mosaic VMEM limit."""
    try:
        phys = int(getattr(pltpu.get_tpu_info(), "vmem_capacity_bytes", 0))
    except Exception:
        phys = 0
    if phys <= 0:
        phys = 64 * 2**20                       # conservative (v7x per-TC)
    if phys >= 100 * 2**20:                     # v5e / v6e: 128 MiB physical
        vmem_limit = 96 * 2**20
        target_block = 8 * 2**20                # logits bytes per block
    else:                                       # v7x (64 MiB) or unknown
        vmem_limit = 48 * 2**20
        target_block = 4 * 2**20

    # VMEM bytes per batch row: 2x double-buffered logits + labels, ~6 f32
    # tile-sized temporaries the compiler materializes, and the sublane-padded
    # (1, TB) output block (x2 buffers).
    per_row = (2 * nclass * logits_itemsize
               + 2 * labels_row_bytes
               + 6 * nclass * 4
               + 2 * 8 * 4)
    rows_cap = max(8, int(0.70 * vmem_limit) // per_row)
    rows = max(8, target_block // max(1, nclass * logits_itemsize))
    rows = min(rows, rows_cap)
    rows = max(8, (rows // 8) * 8)

    if rows >= batch:
        if batch >= 4096:
            # Keep >=2 grid steps so "parallel" can shard across v7x's 2 TCs.
            rows = ((((batch + 1) // 2) + 7) // 8) * 8
        else:
            rows = batch                        # single full-extent block
    return rows, vmem_limit


# ---------------------------------------------------------------------------
# Wrapper (module forward: (logits, code_logits, labels, onehot) -> loss pair)
# ---------------------------------------------------------------------------
def orthohash_loss(logits, code_logits, labels, onehot=True, *,
                   ce=1.0, s=8.0, m=0.2):
    """OrthoHashLoss.forward (default config). Returns (loss, loss_batch).

    quan=0 in the default config -> code_logits never contributes and is not
    read by the kernel.
    """
    batch, nclass = logits.shape
    item = jnp.dtype(logits.dtype).itemsize

    if onehot:
        # Stream the one-hot labels straight into the kernel: single fused
        # pass, no wrapper-side argmax (no second BxC HBM read).
        lab_item = jnp.dtype(labels.dtype).itemsize
        rows, vmem_limit = _choose_tiling(batch, nclass, item, nclass * lab_item)
        nblk = pl.cdiv(batch, rows)
        kernel = functools.partial(_ce_onehot_kernel, s=float(s), m=float(m))
        in_specs = [pl.BlockSpec((rows, nclass), lambda i: (i, 0)),
                    pl.BlockSpec((rows, nclass), lambda i: (i, 0))]
        operands = (logits, labels)
        label_bytes = batch * nclass * lab_item
    else:
        # Integer class indices, lane-dense (nblk, rows) int32 blocks.
        rows, vmem_limit = _choose_tiling(batch, nclass, item, 8 * 4)
        nblk = pl.cdiv(batch, rows)
        idx = labels.astype(jnp.int32).reshape(batch)
        pad = nblk * rows - batch
        if pad:
            idx = jnp.pad(idx, (0, pad))
        kernel = functools.partial(_ce_index_kernel, s=float(s), m=float(m))
        in_specs = [pl.BlockSpec((rows, nclass), lambda i: (i, 0)),
                    pl.BlockSpec((1, rows), lambda i: (i, 0))]
        operands = (logits, idx.reshape(nblk, rows))
        label_bytes = batch * 4

    loss2d = pl.pallas_call(
        kernel,
        out_shape=jax.ShapeDtypeStruct((nblk, rows), jnp.float32),
        grid=(nblk,),
        in_specs=in_specs,
        out_specs=pl.BlockSpec((1, rows), lambda i: (i, 0)),
        compiler_params=pltpu.CompilerParams(
            dimension_semantics=("parallel",),
            vmem_limit_bytes=vmem_limit),
        cost_estimate=pl.CostEstimate(
            flops=6 * batch * nclass,
            transcendentals=batch * nclass,
            bytes_accessed=batch * nclass * item + label_bytes + batch * 4),
    )(*operands)

    loss_ce_batch = loss2d.reshape(-1)[:batch]        # drop tile padding
    loss_batch = jnp.float32(ce) * loss_ce_batch       # + quan * 0   (quan == 0)
    loss = jnp.float32(ce) * jnp.mean(loss_ce_batch)   # + quan * 0   (quan == 0)
    return loss, loss_batch


# ---------------------------------------------------------------------------
# Pure-JAX reference of the same default-config forward path
# ---------------------------------------------------------------------------
def _reference(logits, labels_onehot, s=8.0, m=0.2, ce=1.0):
    lbl = jnp.argmax(labels_onehot, axis=1)
    y = jax.nn.one_hot(lbl, logits.shape[1], dtype=jnp.float32) * m
    ml = s * (logits.astype(jnp.float32) - y)
    logp = jax.nn.log_softmax(ml, axis=1)
    lb = -jnp.take_along_axis(logp, lbl[:, None], axis=1)[:, 0]
    return ce * jnp.mean(lb), ce * lb


if __name__ == "__main__":
    key = jax.random.PRNGKey(0)
    B, C, Kbits = 8, 32, 16   # batch, num_classes, hash-code length

    k1, k2, k3 = jax.random.split(key, 3)
    logits = jax.random.normal(k1, (B, C), dtype=jnp.float32)
    label_idx = jax.random.randint(k2, (B,), 0, C)
    labels_onehot = jax.nn.one_hot(label_idx, C, dtype=jnp.float32)
    # code_logits exists in the module signature but is unused when quan=0.
    code_logits = jax.random.normal(k3, (B, Kbits), dtype=jnp.float32)

    loss, loss_batch = orthohash_loss(logits, code_logits, labels_onehot,
                                      onehot=True, ce=1.0, s=8.0, m=0.2)
    jax.block_until_ready((loss, loss_batch))

    ref_loss, ref_loss_batch = _reference(logits, labels_onehot)
    assert jnp.allclose(loss, ref_loss, atol=1e-4, rtol=1e-4)
    assert jnp.allclose(loss_batch, ref_loss_batch, atol=1e-4, rtol=1e-4)

    print("KERNEL_OK")
</pallas_src>

<mosaic_0001>
module attributes {stable_mosaic.version = 11 : i64} {
  func.func @_ce_onehot_kernel(%arg0: i32, %arg1: memref<8x32xf32, #tpu.memory_space<vmem>>, %arg2: memref<8x32xf32, #tpu.memory_space<vmem>>, %arg3: memref<1x8xf32, #tpu.memory_space<vmem>>) attributes {dimension_semantics = [#tpu.dimension_semantics<parallel>], iteration_bounds = array<i64: 1>, scalar_prefetch = 0 : i64, scratch_operands = 0 : i64, tpu.core_type = #tpu.core_type<tc>, window_params = [{transform_indices = @transform_0, window_bounds = array<i64: 8, 32>}, {transform_indices = @transform_1, window_bounds = array<i64: 8, 32>}, {transform_indices = @transform_2, window_bounds = array<i64: 1, 8>}]} {
    %c0 = arith.constant 0 : index
    %c0_0 = arith.constant 0 : index
    %0 = vector.load %arg1[%c0, %c0_0] : memref<8x32xf32, #tpu.memory_space<vmem>>, vector<8x32xf32>
    %c0_1 = arith.constant 0 : index
    %c0_2 = arith.constant 0 : index
    %1 = vector.load %arg2[%c0_1, %c0_2] : memref<8x32xf32, #tpu.memory_space<vmem>>, vector<8x32xf32>
    %cst = arith.constant 8.000000e+00 : f32
    %2 = vector.broadcast %cst : f32 to vector<8x32xf32>
    %3 = arith.mulf %0, %2 : vector<8x32xf32>
    %cst_3 = arith.constant 1.600000e+00 : f32
    %4 = vector.broadcast %cst_3 : f32 to vector<8x32xf32>
    %5 = arith.mulf %1, %4 : vector<8x32xf32>
    %6 = arith.subf %3, %5 : vector<8x32xf32>
    %cst_4 = arith.constant dense<0xFF800000> : vector<8xf32>
    %7 = vector.multi_reduction <maximumf>, %6, %cst_4 [1] : vector<8x32xf32> to vector<8xf32>
    %8 = vector.shape_cast %7 : vector<8xf32> to vector<8x1xf32>
    %9 = vector.broadcast %8 : vector<8x1xf32> to vector<8x32xf32>
    %10 = arith.subf %6, %9 : vector<8x32xf32>
    %11 = math.exp %10 : vector<8x32xf32>
    %cst_5 = arith.constant dense<0.000000e+00> : vector<8xf32>
    %12 = vector.multi_reduction <add>, %11, %cst_5 [1] : vector<8x32xf32> to vector<8xf32>
    %13 = vector.shape_cast %12 : vector<8xf32> to vector<8x1xf32>
    %14 = math.log %13 : vector<8x1xf32>
    %15 = arith.addf %14, %8 : vector<8x1xf32>
    %16 = arith.mulf %6, %1 : vector<8x32xf32>
    %cst_6 = arith.constant dense<0.000000e+00> : vector<8xf32>
    %17 = vector.multi_reduction <add>, %16, %cst_6 [1] : vector<8x32xf32> to vector<8xf32>
    %18 = vector.shape_cast %17 : vector<8xf32> to vector<8x1xf32>
    %19 = arith.subf %15, %18 : vector<8x1xf32>
    %20 = vector.shape_cast %19 : vector<8x1xf32> to vector<1x8xf32>
    %c0_7 = arith.constant 0 : index
    %c0_8 = arith.constant 0 : index
    %21 = vector.load %arg3[%c0_7, %c0_8] : memref<1x8xf32, #tpu.memory_space<vmem>>, vector<1x8xf32>
    tpu.vector_store %arg3[%c0_7, %c0_8], %20 {strides = array<i32>} : memref<1x8xf32, #tpu.memory_space<vmem>>, vector<1x8xf32>,
    return
  }
  func.func @transform_0(%arg0: i32) -> (i32, i32) {
    %c0_i32 = arith.constant 0 : i32
    %c0_i32_0 = arith.constant 0 : i32
    return %arg0, %c0_i32 : i32, i32
  }
  func.func @transform_1(%arg0: i32) -> (i32, i32) {
    %c0_i32 = arith.constant 0 : i32
    %c0_i32_0 = arith.constant 0 : i32
    return %arg0, %c0_i32 : i32, i32
  }
  func.func @transform_2(%arg0: i32) -> (i32, i32) {
    %c0_i32 = arith.constant 0 : i32
    %c0_i32_0 = arith.constant 0 : i32
    return %arg0, %c0_i32 : i32, i32
  }
}

</mosaic_0001>

<llo_original>
// kernel: tpu_custom_call.1
$region0: #{tpu_custom_call.1}
  #allocation0 [shape = 'u32[]', space=smem, size = 0x4, offset = 0x4, fixed_abs, tag = 'smem constant byte address 0x4 - core index']
  #allocation1 [shape = 'u32[72,128]{1,0:T(1,128)}', space=vmem, size = 0x9000, scoped, tag = 'internal scratch']
  %s0 = inlined_call_operand.hbm [shape: f32[8,32], index: 0, kind: input, shape index: {}]
  %s1 = inlined_call_operand.hbm [shape: f32[8,32], index: 1, kind: input, shape index: {}]
  %s2 = inlined_call_operand.hbm [shape: f32[1,8], index: 2, kind: output, shape index: {}]
  %s3 = sld [smem:[#allocation0]]
  $region26: #{tpu_custom_call.1} parent=0
    _
  %s5 = ssub.s32 1, %s3
  %s6 = scalar_select 0, %s5, %s3
  $region1: #{tpu_custom_call.1} parent=0
    #allocation2 [shape = 'u8[4096]{0}', space=vmem, size = 0x1000, scoped, tag = 'input window, operand 0, single buffered']
    #allocation3 [shape = 's32[1]{0}', space=sflag, size = 0x4, scoped, tag = 'scoped memory for tpu_custom_call.1']
    #allocation4 [shape = 's32[1]{0}', space=sflag, size = 0x4, scoped, tag = 'scoped memory for tpu_custom_call.1']
    #allocation5 [shape = 'u8[4096]{0}', space=vmem, size = 0x1000, scoped, tag = 'input window, operand 1, single buffered']
    #allocation6 [shape = 's32[1]{0}', space=sflag, size = 0x4, scoped, tag = 'scoped memory for tpu_custom_call.1']
    #allocation7 [shape = 'u8[512]{0}', space=vmem, size = 0x400, scoped, tag = 'output window, operand 0, single buffered']
    %7 = vsyncpa [#allocation3], 0
    %8 = vsyncpa [#allocation6], 0
    %9 = vsyncpa [#allocation4], 0
    // Predicated region
    $region2: #{tpu_custom_call.1} parent=1 // pred_check
      _
    $region3: #{tpu_custom_call.1} parent=1 // pred_check_branch
      %11 = sbr.rel (0) target = $region5
    $region4: #{tpu_custom_call.1} parent=1 // pred_region
      %13 = vsyncadd [#allocation3], 0
      %s15 = sshll.u32 %s0, 4
      %s16 = int_to_ptr.hbm [resolvable:$true] %s15
      %s17 = sshll.u32 [#allocation2], 4
      %s18 = int_to_ptr.vmem [resolvable:$true] %s17
      %20 = dma.hbm_to_vmem [thread:$0]  %s16, 128, %s18, [#allocation3]
    $region5: #{tpu_custom_call.1} parent=1 // pred_fallthru
      _
    // Predicated region
    $region6: #{tpu_custom_call.1} parent=1 // pred_check
      _
    $region7: #{tpu_custom_call.1} parent=1 // pred_check_branch
      %22 = sbr.rel (0) target = $region9
    $region8: #{tpu_custom_call.1} parent=1 // pred_region
      %24 = vsyncadd [#allocation6], 0
      %s26 = sshll.u32 %s1, 4
      %s27 = int_to_ptr.hbm [resolvable:$true] %s26
      %s28 = sshll.u32 [#allocation5], 4
      %s29 = int_to_ptr.vmem [resolvable:$true] %s28
      %31 = dma.hbm_to_vmem [thread:$0]  %s27, 128, %s29, [#allocation6]
    $region9: #{tpu_custom_call.1} parent=1 // pred_fallthru
      _
    // Predicated region
    $region10: #{tpu_custom_call.1} parent=1 // pred_check
      _
    $region11: #{tpu_custom_call.1} parent=1 // pred_check_branch
      %33 = sbr.rel (0) target = $region13
    $region12: #{tpu_custom_call.1} parent=1 // pred_region
      %35 = dma.done [#allocation3], 128
    $region13: #{tpu_custom_call.1} parent=1 // pred_fallthru
      _
    // Predicated region
    $region14: #{tpu_custom_call.1} parent=1 // pred_check
      _
    $region15: #{tpu_custom_call.1} parent=1 // pred_check_branch
      %37 = sbr.rel (0) target = $region17
    $region16: #{tpu_custom_call.1} parent=1 // pred_region
      %39 = dma.done [#allocation6], 128
    $region17: #{tpu_custom_call.1} parent=1 // pred_fallthru
      _
    %v40 = vld [vmem:[#allocation2] sm:$0xff]
    %v41 = vld [vmem:[#allocation5] sm:$0xff]
    %v42 = vmul.f32 %v40, 8.0
    %v43 = vmul.f32 %v41, 1.6
    %v44 = vsub.f32 %v42, %v43
    %vm45 = vcmask 261120
    %v46 = vsel %vm45, %v44, -inf
    %47 = vmax.xlane.f32.xlu0 %v46
    %v48 = vpop.xlane.xlu0 %47
    %v49 = vsub.f32 %v44, %v48
    %v50 = vmul.f32 %v49, 1.442695
    %v51 = vpow.pop %v50
    %v52 = vsel %vm45, %v51, 0.0
    %53 = vadd.xlane.f32.xlu0 %v52
    %v54 = vpop.xlane.xlu0 %53
    %v55 = vlog2.pop %v54
    %v56 = vmul.f32 %v55, 0.6931472
    %v57 = vadd.f32 %v56, %v48
    %v58 = vmul.f32 %v44, %v41
    %v59 = vsel %vm45, %v58, 0.0
    %60 = vadd.xlane.f32.xlu0 %v59
    %v61 = vpop.xlane.xlu0 %60
    %v62 = vsub.f32 %v57, %v61
    %v64 = vlaneseq
    %v65 = vand.u32 %v64, 127
    %v66 = vperm.slane %v62, %v65
    %vm68 = vcmask 57344
    %69 = vst.msk [vmem:[#allocation7] sm:$0x1] %vm68, %v66
    // Predicated region
    $region18: #{tpu_custom_call.1} parent=1 // pred_check
      _
    $region19: #{tpu_custom_call.1} parent=1 // pred_check_branch
      %71 = sbr.rel (0) target = $region21
    $region20: #{tpu_custom_call.1} parent=1 // pred_region
      %73 = vsyncadd [#allocation4], 0
      %s75 = sshll.u32 [#allocation7], 4
      %s76 = int_to_ptr.vmem [resolvable:$true] %s75
      %s77 = sshll.u32 %s2, 4
      %s78 = int_to_ptr.hbm [resolvable:$true] %s77
      %80 = dma.vmem_to_hbm [thread:$0]  %s76, 16, %s78, [#allocation4]
    $region21: #{tpu_custom_call.1} parent=1 // pred_fallthru
      _
    // Predicated region
    $region22: #{tpu_custom_call.1} parent=1 // pred_check
      _
    $region23: #{tpu_custom_call.1} parent=1 // pred_check_branch
      %82 = sbr.rel (0) target = $region25
    $region24: #{tpu_custom_call.1} parent=1 // pred_region
      %84 = dma.done [#allocation4], 16
    $region25: #{tpu_custom_call.1} parent=1 // pred_fallthru
      _
    %85 = vsyncpa [#allocation3], 1
    %86 = vsyncpa [#allocation6], 1
    %87 = vsyncpa [#allocation4], 1

</llo_original>
